<compile_context>
chip_gen: v6e
topology: v6e:2x2x1
jax: 0.10.0
libtpu: 0.0.40
codegen_flags: <defaults>
</compile_context>

<pallas_src>
import jax
import jax.numpy as jnp
from jax.experimental import pallas as pl
from jax.experimental.pallas import tpu as pltpu


_LANE = 128          # lane width
_TILE_R = 512        # rows per grid step (512*128*4B = 256 KiB/tile, VMEM-safe on v7x)


# ---------------------------------------------------------------------------
# Pallas kernel: gridded weighted sum of (1 - x)^2
# ---------------------------------------------------------------------------

def _gen_loss_kernel(x_ref, w_ref, out_ref, acc_ref):
    # x_ref: [TILE_R, 128]  discriminator output values (padded with 1.0)
    # w_ref: [TILE_R, 1]    per-row weight = 1/N_i for that tensor (0 for pad rows)
    @pl.when(pl.program_id(0) == 0)
    def _():
        acc_ref[...] = jnp.zeros_like(acc_ref)

    d = 1.0 - x_ref[...]
    acc_ref[...] += jnp.sum(d * d * w_ref[...], keepdims=True)

    @pl.when(pl.program_id(0) == pl.num_programs(0) - 1)
    def _():
        out_ref[...] = acc_ref[...]


# ---------------------------------------------------------------------------
# Wrapper: pack list of tensors -> one lane-dense slab -> one pallas_call
# ---------------------------------------------------------------------------

def adversarial_generator_loss(disc_outputs):
    """sum_i mean((1 - disc_outputs[i])**2) as a single fused Pallas reduction."""
    rows_x = []
    rows_w = []
    for dg in disc_outputs:
        flat = jnp.ravel(dg).astype(jnp.float32)
        n = flat.shape[0]
        n_rows = -(-n // _LANE)
        pad = n_rows * _LANE - n
        if pad:
            # pad value 1.0 -> (1 - 1)^2 == 0, contributes nothing to the mean
            flat = jnp.pad(flat, (0, pad), constant_values=1.0)
        rows_x.append(flat.reshape(n_rows, _LANE))
        rows_w.append(jnp.full((n_rows, 1), 1.0 / n, jnp.float32))

    x = jnp.concatenate(rows_x, axis=0)
    w = jnp.concatenate(rows_w, axis=0)

    r = x.shape[0]
    r_pad = -(-r // _TILE_R) * _TILE_R
    if r_pad != r:
        x = jnp.pad(x, ((0, r_pad - r), (0, 0)), constant_values=1.0)
        w = jnp.pad(w, ((0, r_pad - r), (0, 0)), constant_values=0.0)

    grid = (r_pad // _TILE_R,)

    out = pl.pallas_call(
        _gen_loss_kernel,
        out_shape=jax.ShapeDtypeStruct((1, 1), jnp.float32),
        grid_spec=pltpu.PrefetchScalarGridSpec(
            num_scalar_prefetch=0,
            grid=grid,
            in_specs=[
                pl.BlockSpec((_TILE_R, _LANE), lambda i: (i, 0)),
                pl.BlockSpec((_TILE_R, 1), lambda i: (i, 0)),
            ],
            out_specs=pl.BlockSpec((1, 1), lambda i: (0, 0)),
            scratch_shapes=[pltpu.VMEM((1, 1), jnp.float32)],
        ),
        compiler_params=pltpu.CompilerParams(
            dimension_semantics=("arbitrary",),   # reduction axis (accumulator)
            vmem_limit_bytes=32 * 1024 * 1024,
        ),
    )(x, w)

    return out[0, 0]


class AdversarialGeneratorLoss:
    """JAX/Pallas equivalent of the PyTorch AdversarialGeneratorLoss module."""

    def __call__(self, disc_outputs):
        return adversarial_generator_loss(disc_outputs)


# ---------------------------------------------------------------------------
# Demo
# ---------------------------------------------------------------------------

if __name__ == "__main__":
    key = jax.random.PRNGKey(0)
    k1, k2, k3, k4, k5 = jax.random.split(key, 5)

    # Typical multi-discriminator output list (small, mixed, non-lane-aligned shapes).
    disc_outputs = [
        jax.random.normal(k1, (2, 1, 16, 8), jnp.float32),
        jax.random.normal(k2, (2, 1, 33), jnp.float32),
        jax.random.normal(k3, (2, 64), jnp.float32),
        jax.random.normal(k4, (2, 4, 7, 5), jnp.float32),
        jax.random.normal(k5, (2, 130), jnp.float32),
    ]

    loss_mod = AdversarialGeneratorLoss()
    loss = loss_mod(disc_outputs)
    loss = jax.block_until_ready(loss)

    # Pure-JAX reference: sum_i mean((1 - dg_i)^2)
    ref = sum(jnp.mean((1.0 - dg) ** 2) for dg in disc_outputs)
    ref = jax.block_until_ready(ref)

    assert bool(jnp.isfinite(loss)), "loss is not finite"
    assert abs(float(loss) - float(ref)) < 1e-4 * max(1.0, abs(float(ref))), (
        f"pallas={float(loss)} vs ref={float(ref)}")
    print("KERNEL_OK")
</pallas_src>

<mosaic_0001>
module attributes {stable_mosaic.version = 11 : i64} {
  func.func @_gen_loss_kernel(%arg0: i32, %arg1: memref<512x128xf32, #tpu.memory_space<vmem>>, %arg2: memref<512x1xf32, #tpu.memory_space<vmem>>, %arg3: memref<1x1xf32, #tpu.memory_space<vmem>>, %arg4: memref<1x1xf32, #tpu.memory_space<vmem>>) attributes {dimension_semantics = [#tpu.dimension_semantics<arbitrary>], iteration_bounds = array<i64: 1>, scalar_prefetch = 0 : i64, scratch_operands = 1 : i64, tpu.core_type = #tpu.core_type<tc>, window_params = [{transform_indices = @transform_0, window_bounds = array<i64: 512, 128>}, {transform_indices = @transform_1, window_bounds = array<i64: 512, 1>}, {pipeline_mode = #tpu.pipeline_mode<synchronous>, transform_indices = @transform_2, window_bounds = array<i64: 1, 1>}]} {
    %c0_i32 = arith.constant 0 : i32
    %0 = arith.cmpi eq, %arg0, %c0_i32 : i32
    %1 = arith.extui %0 : i1 to i32
    %c0_i32_0 = arith.constant 0 : i32
    %2 = arith.cmpi ne, %1, %c0_i32_0 : i32
    scf.if %2 {
      %cst_11 = arith.constant 0.000000e+00 : f32
      %21 = vector.broadcast %cst_11 : f32 to vector<1x1xf32>
      %c0_12 = arith.constant 0 : index
      %c0_13 = arith.constant 0 : index
      %22 = vector.load %arg4[%c0_12, %c0_13] : memref<1x1xf32, #tpu.memory_space<vmem>>, vector<1x1xf32>
      tpu.vector_store %arg4[%c0_12, %c0_13], %21 {strides = array<i32>} : memref<1x1xf32, #tpu.memory_space<vmem>>, vector<1x1xf32>,
    } else {
    }
    %c0 = arith.constant 0 : index
    %c0_1 = arith.constant 0 : index
    %3 = vector.load %arg1[%c0, %c0_1] : memref<512x128xf32, #tpu.memory_space<vmem>>, vector<512x128xf32>
    %cst = arith.constant 1.000000e+00 : f32
    %4 = vector.broadcast %cst : f32 to vector<512x128xf32>
    %5 = arith.subf %4, %3 : vector<512x128xf32>
    %c0_2 = arith.constant 0 : index
    %c0_3 = arith.constant 0 : index
    %6 = vector.load %arg4[%c0_2, %c0_3] : memref<1x1xf32, #tpu.memory_space<vmem>>, vector<1x1xf32>
    %7 = arith.mulf %5, %5 : vector<512x128xf32>
    %c0_4 = arith.constant 0 : index
    %c0_5 = arith.constant 0 : index
    %8 = vector.load %arg2[%c0_4, %c0_5] : memref<512x1xf32, #tpu.memory_space<vmem>>, vector<512x1xf32>
    %9 = vector.broadcast %8 : vector<512x1xf32> to vector<512x128xf32>
    %10 = arith.mulf %7, %9 : vector<512x128xf32>
    %11 = vector.shape_cast %10 : vector<512x128xf32> to vector<1x512x128xf32>
    %cst_6 = arith.constant dense<0.000000e+00> : vector<1xf32>
    %12 = vector.multi_reduction <add>, %11, %cst_6 [1, 2] : vector<1x512x128xf32> to vector<1xf32>
    %13 = vector.shape_cast %12 : vector<1xf32> to vector<1x1x1xf32>
    %14 = vector.extract %13[0, 0, 0] : f32 from vector<1x1x1xf32>
    %15 = vector.broadcast %14 : f32 to vector<1x1xf32>
    %16 = arith.addf %6, %15 : vector<1x1xf32>
    %c0_7 = arith.constant 0 : index
    %c0_8 = arith.constant 0 : index
    %17 = vector.load %arg4[%c0_7, %c0_8] : memref<1x1xf32, #tpu.memory_space<vmem>>, vector<1x1xf32>
    tpu.vector_store %arg4[%c0_7, %c0_8], %16 {strides = array<i32>} : memref<1x1xf32, #tpu.memory_space<vmem>>, vector<1x1xf32>,
    %c0_i32_9 = arith.constant 0 : i32
    %18 = arith.cmpi eq, %arg0, %c0_i32_9 : i32
    %19 = arith.extui %18 : i1 to i32
    %c0_i32_10 = arith.constant 0 : i32
    %20 = arith.cmpi ne, %19, %c0_i32_10 : i32
    scf.if %20 {
      %c0_11 = arith.constant 0 : index
      %c0_12 = arith.constant 0 : index
      %21 = vector.load %arg4[%c0_11, %c0_12] : memref<1x1xf32, #tpu.memory_space<vmem>>, vector<1x1xf32>
      %c0_13 = arith.constant 0 : index
      %c0_14 = arith.constant 0 : index
      %22 = vector.load %arg3[%c0_13, %c0_14] : memref<1x1xf32, #tpu.memory_space<vmem>>, vector<1x1xf32>
      tpu.vector_store %arg3[%c0_13, %c0_14], %21 {strides = array<i32>} : memref<1x1xf32, #tpu.memory_space<vmem>>, vector<1x1xf32>,
    } else {
    }
    return
  }
  func.func @transform_0(%arg0: i32) -> (i32, i32) {
    %c0_i32 = arith.constant 0 : i32
    %c0_i32_0 = arith.constant 0 : i32
    return %arg0, %c0_i32 : i32, i32
  }
  func.func @transform_1(%arg0: i32) -> (i32, i32) {
    %c0_i32 = arith.constant 0 : i32
    %c0_i32_0 = arith.constant 0 : i32
    return %arg0, %c0_i32 : i32, i32
  }
  func.func @transform_2(%arg0: i32) -> (i32, i32) {
    %c0_i32 = arith.constant 0 : i32
    %c0_i32_0 = arith.constant 0 : i32
    %c0_i32_1 = arith.constant 0 : i32
    return %c0_i32, %c0_i32_0 : i32, i32
  }
}

</mosaic_0001>

<llo_original>
// kernel: tpu_custom_call.1
$region0: #{tpu_custom_call.1}
  #allocation0 [shape = 'u32[]', space=smem, size = 0x4, offset = 0x4, fixed_abs, tag = 'smem constant byte address 0x4 - core index']
  #allocation1 [shape = 'u32[144,128]{1,0:T(1,128)}', space=vmem, size = 0x12000, scoped, tag = 'internal scratch']
  #allocation2 [shape = 'f32[1,1]{1,0:T(1,128)}', space=vmem, size = 0x200, scoped, tag = 'scratch operand']
  %s0 = inlined_call_operand.vmem [shape: f32[512,128], index: 0, kind: input, shape index: {}]
  %s1 = inlined_call_operand.vmem [shape: f32[512,1], index: 1, kind: input, shape index: {}]
  %s2 = inlined_call_operand.hbm [shape: f32[1,1], index: 2, kind: output, shape index: {}]
  %s3 = sld [smem:[#allocation0]]
  $region26: #{tpu_custom_call.1} parent=0
    _
  %s5 = ssub.s32 1, %s3
  %s6 = scalar_select 0, %s5, %s3
  $region1: #{tpu_custom_call.1} parent=0
    #allocation3 [shape = 'u8[512]{0}', space=vmem, size = 0x400, scoped, tag = 'output window, operand 0, single buffered']
    #allocation4 [shape = 's32[1]{0}', space=sflag, size = 0x4, scoped, tag = 'scoped memory for tpu_custom_call.1']
    %7 = vsyncpa [#allocation4], 0
    // Predicated region
    $region2: #{tpu_custom_call.1} parent=1 // pred_check
      _
    $region3: #{tpu_custom_call.1} parent=1 // pred_check_branch
      %9 = sbr.rel (0) target = $region5
    $region4: #{tpu_custom_call.1} parent=1 // pred_region
      _
    $region5: #{tpu_custom_call.1} parent=1 // pred_fallthru
      _
    // Predicated region
    $region6: #{tpu_custom_call.1} parent=1 // pred_check
      _
    $region7: #{tpu_custom_call.1} parent=1 // pred_check_branch
      %11 = sbr.rel (0) target = $region9
    $region8: #{tpu_custom_call.1} parent=1 // pred_region
      _
    $region9: #{tpu_custom_call.1} parent=1 // pred_fallthru
      _
    %p12 = scmp.eq.s32.totalorder 0, 0
    // Predicated region
    $region10: #{tpu_custom_call.1} parent=1 // pred_check
      %p13 = pneg %p12
    $region11: #{tpu_custom_call.1} parent=1 // pred_check_branch
      %15 = sbr.rel (%p13) target = $region13
    $region12: #{tpu_custom_call.1} parent=1 // pred_region
      %vm16 = vcmask 0
      %17 = vst.msk [vmem:[#allocation2] sm:$0x1] %vm16, 0.0
    $region13: #{tpu_custom_call.1} parent=1 // pred_fallthru
      _
    %v18 = vld [vmem:[%s0] sm:$0xff]
    %v19 = vld [vmem:[%s0 + $0x8] sm:$0xff]
    %v20 = vld [vmem:[%s0 + $0x10] sm:$0xff]
    %v21 = vld [vmem:[%s0 + $0x18] sm:$0xff]
    %v22 = vld [vmem:[%s0 + $0x20] sm:$0xff]
    %v23 = vld [vmem:[%s0 + $0x28] sm:$0xff]
    %v24 = vld [vmem:[%s0 + $0x30] sm:$0xff]
    %v25 = vld [vmem:[%s0 + $0x38] sm:$0xff]
    %v26 = vld [vmem:[%s0 + $0x40] sm:$0xff]
    %v27 = vld [vmem:[%s0 + $0x48] sm:$0xff]
    %v28 = vld [vmem:[%s0 + $0x50] sm:$0xff]
    %v29 = vld [vmem:[%s0 + $0x58] sm:$0xff]
    %v30 = vld [vmem:[%s0 + $0x60] sm:$0xff]
    %v31 = vld [vmem:[%s0 + $0x68] sm:$0xff]
    %v32 = vld [vmem:[%s0 + $0x70] sm:$0xff]
    %v33 = vld [vmem:[%s0 + $0x78] sm:$0xff]
    %v34 = vld [vmem:[%s0 + $0x80] sm:$0xff]
    %v35 = vld [vmem:[%s0 + $0x88] sm:$0xff]
    %v36 = vld [vmem:[%s0 + $0x90] sm:$0xff]
    %v37 = vld [vmem:[%s0 + $0x98] sm:$0xff]
    %v38 = vld [vmem:[%s0 + $0xa0] sm:$0xff]
    %v39 = vld [vmem:[%s0 + $0xa8] sm:$0xff]
    %v40 = vld [vmem:[%s0 + $0xb0] sm:$0xff]
    %v41 = vld [vmem:[%s0 + $0xb8] sm:$0xff]
    %v42 = vld [vmem:[%s0 + $0xc0] sm:$0xff]
    %v43 = vld [vmem:[%s0 + $0xc8] sm:$0xff]
    %v44 = vld [vmem:[%s0 + $0xd0] sm:$0xff]
    %v45 = vld [vmem:[%s0 + $0xd8] sm:$0xff]
    %v46 = vld [vmem:[%s0 + $0xe0] sm:$0xff]
    %v47 = vld [vmem:[%s0 + $0xe8] sm:$0xff]
    %v48 = vld [vmem:[%s0 + $0xf0] sm:$0xff]
    %v49 = vld [vmem:[%s0 + $0xf8] sm:$0xff]
    %v50 = vld [vmem:[%s0 + $0x100] sm:$0xff]
    %v51 = vld [vmem:[%s0 + $0x108] sm:$0xff]
    %v52 = vld [vmem:[%s0 + $0x110] sm:$0xff]
    %v53 = vld [vmem:[%s0 + $0x118] sm:$0xff]
    %v54 = vld [vmem:[%s0 + $0x120] sm:$0xff]
    %v55 = vld [vmem:[%s0 + $0x128] sm:$0xff]
    %v56 = vld [vmem:[%s0 + $0x130] sm:$0xff]
    %v57 = vld [vmem:[%s0 + $0x138] sm:$0xff]
    %v58 = vld [vmem:[%s0 + $0x140] sm:$0xff]
    %v59 = vld [vmem:[%s0 + $0x148] sm:$0xff]
    %v60 = vld [vmem:[%s0 + $0x150] sm:$0xff]
    %v61 = vld [vmem:[%s0 + $0x158] sm:$0xff]
    %v62 = vld [vmem:[%s0 + $0x160] sm:$0xff]
    %v63 = vld [vmem:[%s0 + $0x168] sm:$0xff]
    %v64 = vld [vmem:[%s0 + $0x170] sm:$0xff]
    %v65 = vld [vmem:[%s0 + $0x178] sm:$0xff]
    %v66 = vld [vmem:[%s0 + $0x180] sm:$0xff]
    %v67 = vld [vmem:[%s0 + $0x188] sm:$0xff]
    %v68 = vld [vmem:[%s0 + $0x190] sm:$0xff]
    %v69 = vld [vmem:[%s0 + $0x198] sm:$0xff]
    %v70 = vld [vmem:[%s0 + $0x1a0] sm:$0xff]
    %v71 = vld [vmem:[%s0 + $0x1a8] sm:$0xff]
    %v72 = vld [vmem:[%s0 + $0x1b0] sm:$0xff]
    %v73 = vld [vmem:[%s0 + $0x1b8] sm:$0xff]
    %v74 = vld [vmem:[%s0 + $0x1c0] sm:$0xff]
    %v75 = vld [vmem:[%s0 + $0x1c8] sm:$0xff]
    %v76 = vld [vmem:[%s0 + $0x1d0] sm:$0xff]
    %v77 = vld [vmem:[%s0 + $0x1d8] sm:$0xff]
    %v78 = vld [vmem:[%s0 + $0x1e0] sm:$0xff]
    %v79 = vld [vmem:[%s0 + $0x1e8] sm:$0xff]
    %v80 = vld [vmem:[%s0 + $0x1f0] sm:$0xff]
    %v81 = vld [vmem:[%s0 + $0x1f8] sm:$0xff]
    %v82 = vsub.f32 1.0, %v18
    %v83 = vsub.f32 1.0, %v19
    %v84 = vsub.f32 1.0, %v20
    %v85 = vsub.f32 1.0, %v21
    %v86 = vsub.f32 1.0, %v22
    %v87 = vsub.f32 1.0, %v23
    %v88 = vsub.f32 1.0, %v24
    %v89 = vsub.f32 1.0, %v25
    %v90 = vsub.f32 1.0, %v26
    %v91 = vsub.f32 1.0, %v27
    %v92 = vsub.f32 1.0, %v28
    %v93 = vsub.f32 1.0, %v29
    %v94 = vsub.f32 1.0, %v30
    %v95 = vsub.f32 1.0, %v31
    %v96 = vsub.f32 1.0, %v32
    %v97 = vsub.f32 1.0, %v33
    %v98 = vsub.f32 1.0, %v34
    %v99 = vsub.f32 1.0, %v35
    %v100 = vsub.f32 1.0, %v36
    %v101 = vsub.f32 1.0, %v37
    %v102 = vsub.f32 1.0, %v38
    %v103 = vsub.f32 1.0, %v39
    %v104 = vsub.f32 1.0, %v40
    %v105 = vsub.f32 1.0, %v41
    %v106 = vsub.f32 1.0, %v42
    %v107 = vsub.f32 1.0, %v43
    %v108 = vsub.f32 1.0, %v44
    %v109 = vsub.f32 1.0, %v45
    %v110 = vsub.f32 1.0, %v46
    %v111 = vsub.f32 1.0, %v47
    %v112 = vsub.f32 1.0, %v48
    %v113 = vsub.f32 1.0, %v49
    %v114 = vsub.f32 1.0, %v50
    %v115 = vsub.f32 1.0, %v51
    %v116 = vsub.f32 1.0, %v52
    %v117 = vsub.f32 1.0, %v53
    %v118 = vsub.f32 1.0, %v54
    %v119 = vsub.f32 1.0, %v55
    %v120 = vsub.f32 1.0, %v56
    %v121 = vsub.f32 1.0, %v57
    %v122 = vsub.f32 1.0, %v58
    %v123 = vsub.f32 1.0, %v59
    %v124 = vsub.f32 1.0, %v60
    %v125 = vsub.f32 1.0, %v61
    %v126 = vsub.f32 1.0, %v62
    %v127 = vsub.f32 1.0, %v63
    %v128 = vsub.f32 1.0, %v64
    %v129 = vsub.f32 1.0, %v65
    %v130 = vsub.f32 1.0, %v66
    %v131 = vsub.f32 1.0, %v67
    %v132 = vsub.f32 1.0, %v68
    %v133 = vsub.f32 1.0, %v69
    %v134 = vsub.f32 1.0, %v70
    %v135 = vsub.f32 1.0, %v71
    %v136 = vsub.f32 1.0, %v72
    %v137 = vsub.f32 1.0, %v73
    %v138 = vsub.f32 1.0, %v74
    %v139 = vsub.f32 1.0, %v75
    %v140 = vsub.f32 1.0, %v76
    %v141 = vsub.f32 1.0, %v77
    %v142 = vsub.f32 1.0, %v78
    %v143 = vsub.f32 1.0, %v79
    %v144 = vsub.f32 1.0, %v80
    %v145 = vsub.f32 1.0, %v81
    %v146 = vld [vmem:[#allocation2] sm:$0x1]
    %v147 = vmul.f32 %v82, %v82
    %v148 = vmul.f32 %v83, %v83
    %v149 = vmul.f32 %v84, %v84
    %v150 = vmul.f32 %v85, %v85
    %v151 = vmul.f32 %v86, %v86
    %v152 = vmul.f32 %v87, %v87
    %v153 = vmul.f32 %v88, %v88
    %v154 = vmul.f32 %v89, %v89
    %v155 = vmul.f32 %v90, %v90
    %v156 = vmul.f32 %v91, %v91
    %v157 = vmul.f32 %v92, %v92
    %v158 = vmul.f32 %v93, %v93
    %v159 = vmul.f32 %v94, %v94
    %v160 = vmul.f32 %v95, %v95
    %v161 = vmul.f32 %v96, %v96
    %v162 = vmul.f32 %v97, %v97
    %v163 = vmul.f32 %v98, %v98
    %v164 = vmul.f32 %v99, %v99
    %v165 = vmul.f32 %v100, %v100
    %v166 = vmul.f32 %v101, %v101
    %v167 = vmul.f32 %v102, %v102
    %v168 = vmul.f32 %v103, %v103
    %v169 = vmul.f32 %v104, %v104
    %v170 = vmul.f32 %v105, %v105
    %v171 = vmul.f32 %v106, %v106
    %v172 = vmul.f32 %v107, %v107
    %v173 = vmul.f32 %v108, %v108
    %v174 = vmul.f32 %v109, %v109
    %v175 = vmul.f32 %v110, %v110
    %v176 = vmul.f32 %v111, %v111
    %v177 = vmul.f32 %v112, %v112
    %v178 = vmul.f32 %v113, %v113
    %v179 = vmul.f32 %v114, %v114
    %v180 = vmul.f32 %v115, %v115
    %v181 = vmul.f32 %v116, %v116
    %v182 = vmul.f32 %v117, %v117
    %v183 = vmul.f32 %v118, %v118
    %v184 = vmul.f32 %v119, %v119
    %v185 = vmul.f32 %v120, %v120
    %v186 = vmul.f32 %v121, %v121
    %v187 = vmul.f32 %v122, %v122
    %v188 = vmul.f32 %v123, %v123
    %v189 = vmul.f32 %v124, %v124
    %v190 = vmul.f32 %v125, %v125
    %v191 = vmul.f32 %v126, %v126
    %v192 = vmul.f32 %v127, %v127
    %v193 = vmul.f32 %v128, %v128
    %v194 = vmul.f32 %v129, %v129
    %v195 = vmul.f32 %v130, %v130
    %v196 = vmul.f32 %v131, %v131
    %v197 = vmul.f32 %v132, %v132
    %v198 = vmul.f32 %v133, %v133
    %v199 = vmul.f32 %v134, %v134
    %v200 = vmul.f32 %v135, %v135
    %v201 = vmul.f32 %v136, %v136
    %v202 = vmul.f32 %v137, %v137
    %v203 = vmul.f32 %v138, %v138
    %v204 = vmul.f32 %v139, %v139
    %v205 = vmul.f32 %v140, %v140
    %v206 = vmul.f32 %v141, %v141
    %v207 = vmul.f32 %v142, %v142
    %v208 = vmul.f32 %v143, %v143
    %v209 = vmul.f32 %v144, %v144
    %v210 = vmul.f32 %v145, %v145
    %v211 = vld [vmem:[%s1] sm:$0xff]
    %v212 = vld [vmem:[%s1 + $0x8] sm:$0xff]
    %v213 = vld [vmem:[%s1 + $0x10] sm:$0xff]
    %v214 = vld [vmem:[%s1 + $0x18] sm:$0xff]
    %v215 = vld [vmem:[%s1 + $0x20] sm:$0xff]
    %v216 = vld [vmem:[%s1 + $0x28] sm:$0xff]
    %v217 = vld [vmem:[%s1 + $0x30] sm:$0xff]
    %v218 = vld [vmem:[%s1 + $0x38] sm:$0xff]
    %v219 = vld [vmem:[%s1 + $0x40] sm:$0xff]
    %v220 = vld [vmem:[%s1 + $0x48] sm:$0xff]
    %v221 = vld [vmem:[%s1 + $0x50] sm:$0xff]
    %v222 = vld [vmem:[%s1 + $0x58] sm:$0xff]
    %v223 = vld [vmem:[%s1 + $0x60] sm:$0xff]
    %v224 = vld [vmem:[%s1 + $0x68] sm:$0xff]
    %v225 = vld [vmem:[%s1 + $0x70] sm:$0xff]
    %v226 = vld [vmem:[%s1 + $0x78] sm:$0xff]
    %v227 = vld [vmem:[%s1 + $0x80] sm:$0xff]
    %v228 = vld [vmem:[%s1 + $0x88] sm:$0xff]
    %v229 = vld [vmem:[%s1 + $0x90] sm:$0xff]
    %v230 = vld [vmem:[%s1 + $0x98] sm:$0xff]
    %v231 = vld [vmem:[%s1 + $0xa0] sm:$0xff]
    %v232 = vld [vmem:[%s1 + $0xa8] sm:$0xff]
    %v233 = vld [vmem:[%s1 + $0xb0] sm:$0xff]
    %v234 = vld [vmem:[%s1 + $0xb8] sm:$0xff]
    %v235 = vld [vmem:[%s1 + $0xc0] sm:$0xff]
    %v236 = vld [vmem:[%s1 + $0xc8] sm:$0xff]
    %v237 = vld [vmem:[%s1 + $0xd0] sm:$0xff]
    %v238 = vld [vmem:[%s1 + $0xd8] sm:$0xff]
    %v239 = vld [vmem:[%s1 + $0xe0] sm:$0xff]
    %v240 = vld [vmem:[%s1 + $0xe8] sm:$0xff]
    %v241 = vld [vmem:[%s1 + $0xf0] sm:$0xff]
    %v242 = vld [vmem:[%s1 + $0xf8] sm:$0xff]
    %v243 = vld [vmem:[%s1 + $0x100] sm:$0xff]
    %v244 = vld [vmem:[%s1 + $0x108] sm:$0xff]
    %v245 = vld [vmem:[%s1 + $0x110] sm:$0xff]
    %v246 = vld [vmem:[%s1 + $0x118] sm:$0xff]
    %v247 = vld [vmem:[%s1 + $0x120] sm:$0xff]
    %v248 = vld [vmem:[%s1 + $0x128] sm:$0xff]
    %v249 = vld [vmem:[%s1 + $0x130] sm:$0xff]
    %v250 = vld [vmem:[%s1 + $0x138] sm:$0xff]
    %v251 = vld [vmem:[%s1 + $0x140] sm:$0xff]
    %v252 = vld [vmem:[%s1 + $0x148] sm:$0xff]
    %v253 = vld [vmem:[%s1 + $0x150] sm:$0xff]
    %v254 = vld [vmem:[%s1 + $0x158] sm:$0xff]
    %v255 = vld [vmem:[%s1 + $0x160] sm:$0xff]
    %v256 = vld [vmem:[%s1 + $0x168] sm:$0xff]
    %v257 = vld [vmem:[%s1 + $0x170] sm:$0xff]
    %v258 = vld [vmem:[%s1 + $0x178] sm:$0xff]
    %v259 = vld [vmem:[%s1 + $0x180] sm:$0xff]
    %v260 = vld [vmem:[%s1 + $0x188] sm:$0xff]
    %v261 = vld [vmem:[%s1 + $0x190] sm:$0xff]
    %v262 = vld [vmem:[%s1 + $0x198] sm:$0xff]
    %v263 = vld [vmem:[%s1 + $0x1a0] sm:$0xff]
    %v264 = vld [vmem:[%s1 + $0x1a8] sm:$0xff]
    %v265 = vld [vmem:[%s1 + $0x1b0] sm:$0xff]
    %v266 = vld [vmem:[%s1 + $0x1b8] sm:$0xff]
    %v267 = vld [vmem:[%s1 + $0x1c0] sm:$0xff]
    %v268 = vld [vmem:[%s1 + $0x1c8] sm:$0xff]
    %v269 = vld [vmem:[%s1 + $0x1d0] sm:$0xff]
    %v270 = vld [vmem:[%s1 + $0x1d8] sm:$0xff]
    %v271 = vld [vmem:[%s1 + $0x1e0] sm:$0xff]
    %v272 = vld [vmem:[%s1 + $0x1e8] sm:$0xff]
    %v273 = vld [vmem:[%s1 + $0x1f0] sm:$0xff]
    %v274 = vld [vmem:[%s1 + $0x1f8] sm:$0xff]
    %276 = vset.pattern.permute.xlu0 0
    %277 = vperm.xlu0 %276, %v211
    %v278 = vpop.permute.xlu0 %277
    %281 = vset.pattern.permute.xlu0 0
    %282 = vperm.xlu0 %281, %v212
    %v283 = vpop.permute.xlu0 %282
    %286 = vset.pattern.permute.xlu0 0
    %287 = vperm.xlu0 %286, %v213
    %v288 = vpop.permute.xlu0 %287
    %291 = vset.pattern.permute.xlu0 0
    %292 = vperm.xlu0 %291, %v214
    %v293 = vpop.permute.xlu0 %292
    %296 = vset.pattern.permute.xlu0 0
    %297 = vperm.xlu0 %296, %v215
    %v298 = vpop.permute.xlu0 %297
    %301 = vset.pattern.permute.xlu0 0
    %302 = vperm.xlu0 %301, %v216
    %v303 = vpop.permute.xlu0 %302
    %306 = vset.pattern.permute.xlu0 0
    %307 = vperm.xlu0 %306, %v217
    %v308 = vpop.permute.xlu0 %307
    %311 = vset.pattern.permute.xlu0 0
    %312 = vperm.xlu0 %311, %v218
    %v313 = vpop.permute.xlu0 %312
    %316 = vset.pattern.permute.xlu0 0
    %317 = vperm.xlu0 %316, %v219
    %v318 = vpop.permute.xlu0 %317
    %321 = vset.pattern.permute.xlu0 0
    %322 = vperm.xlu0 %321, %v220
    %v323 = vpop.permute.xlu0 %322
    %326 = vset.pattern.permute.xlu0 0
    %327 = vperm.xlu0 %326, %v221
    %v328 = vpop.permute.xlu0 %327
    %331 = vset.pattern.permute.xlu0 0
    %332 = vperm.xlu0 %331, %v222
    %v333 = vpop.permute.xlu0 %332
    %336 = vset.pattern.permute.xlu0 0
    %337 = vperm.xlu0 %336, %v223
    %v338 = vpop.permute.xlu0 %337
    %341 = vset.pattern.permute.xlu0 0
    %342 = vperm.xlu0 %341, %v224
    %v343 = vpop.permute.xlu0 %342
    %346 = vset.pattern.permute.xlu0 0
    %347 = vperm.xlu0 %346, %v225
    %v348 = vpop.permute.xlu0 %347
    %351 = vset.pattern.permute.xlu0 0
    %352 = vperm.xlu0 %351, %v226
    %v353 = vpop.permute.xlu0 %352
    %356 = vset.pattern.permute.xlu0 0
    %357 = vperm.xlu0 %356, %v227
    %v358 = vpop.permute.xlu0 %357
    %361 = vset.pattern.permute.xlu0 0
    %362 = vperm.xlu0 %361, %v228
    %v363 = vpop.permute.xlu0 %362
    %366 = vset.pattern.permute.xlu0 0
    %367 = vperm.xlu0 %366, %v229
    %v368 = vpop.permute.xlu0 %367
    %371 = vset.pattern.permute.xlu0 0
    %372 = vperm.xlu0 %371, %v230
    %v373 = vpop.permute.xlu0 %372
    %376 = vset.pattern.permute.xlu0 0
    %377 = vperm.xlu0 %376, %v231
    %v378 = vpop.permute.xlu0 %377
    %381 = vset.pattern.permute.xlu0 0
    %382 = vperm.xlu0 %381, %v232
    %v383 = vpop.permute.xlu0 %382
    %386 = vset.pattern.permute.xlu0 0
    %387 = vperm.xlu0 %386, %v233
    %v388 = vpop.permute.xlu0 %387
    %391 = vset.pattern.permute.xlu0 0
    %392 = vperm.xlu0 %391, %v234
    %v393 = vpop.permute.xlu0 %392
    %396 = vset.pattern.permute.xlu0 0
    %397 = vperm.xlu0 %396, %v235
    %v398 = vpop.permute.xlu0 %397
    %401 = vset.pattern.permute.xlu0 0
    %402 = vperm.xlu0 %401, %v236
    %v403 = vpop.permute.xlu0 %402
    %406 = vset.pattern.permute.xlu0 0
    %407 = vperm.xlu0 %406, %v237
    %v408 = vpop.permute.xlu0 %407
    %411 = vset.pattern.permute.xlu0 0
    %412 = vperm.xlu0 %411, %v238
    %v413 = vpop.permute.xlu0 %412
    %416 = vset.pattern.permute.xlu0 0
    %417 = vperm.xlu0 %416, %v239
    %v418 = vpop.permute.xlu0 %417
    %421 = vset.pattern.permute.xlu0 0
    %422 = vperm.xlu0 %421, %v240
    %v423 = vpop.permute.xlu0 %422
    %426 = vset.pattern.permute.xlu0 0
    %427 = vperm.xlu0 %426, %v241
    %v428 = vpop.permute.xlu0 %427
    %431 = vset.pattern.permute.xlu0 0
    %432 = vperm.xlu0 %431, %v242
    %v433 = vpop.permute.xlu0 %432
    %436 = vset.pattern.permute.xlu0 0
    %437 = vperm.xlu0 %436, %v243
    %v438 = vpop.permute.xlu0 %437
    %441 = vset.pattern.permute.xlu0 0
    %442 = vperm.xlu0 %441, %v244
    %v443 = vpop.permute.xlu0 %442
    %446 = vset.pattern.permute.xlu0 0
    %447 = vperm.xlu0 %446, %v245
    %v448 = vpop.permute.xlu0 %447
    %451 = vset.pattern.permute.xlu0 0
    %452 = vperm.xlu0 %451, %v246
    %v453 = vpop.permute.xlu0 %452
    %456 = vset.pattern.permute.xlu0 0
    %457 = vperm.xlu0 %456, %v247
    %v458 = vpop.permute.xlu0 %457
    %461 = vset.pattern.permute.xlu0 0
    %462 = vperm.xlu0 %461, %v248
    %v463 = vpop.permute.xlu0 %462
    %466 = vset.pattern.permute.xlu0 0
    %467 = vperm.xlu0 %466, %v249
    %v468 = vpop.permute.xlu0 %467
    %471 = vset.pattern.permute.xlu0 0
    %472 = vperm.xlu0 %471, %v250
    %v473 = vpop.permute.xlu0 %472
    %476 = vset.pattern.permute.xlu0 0
    %477 = vperm.xlu0 %476, %v251
    %v478 = vpop.permute.xlu0 %477
    %481 = vset.pattern.permute.xlu0 0
    %482 = vperm.xlu0 %481, %v252
    %v483 = vpop.permute.xlu0 %482
    %486 = vset.pattern.permute.xlu0 0
    %487 = vperm.xlu0 %486, %v253
    %v488 = vpop.permute.xlu0 %487
    %491 = vset.pattern.permute.xlu0 0
    %492 = vperm.xlu0 %491, %v254
    %v493 = vpop.permute.xlu0 %492
    %496 = vset.pattern.permute.xlu0 0
    %497 = vperm.xlu0 %496, %v255
    %v498 = vpop.permute.xlu0 %497
    %501 = vset.pattern.permute.xlu0 0
    %502 = vperm.xlu0 %501, %v256
    %v503 = vpop.permute.xlu0 %502
    %506 = vset.pattern.permute.xlu0 0
    %507 = vperm.xlu0 %506, %v257
    %v508 = vpop.permute.xlu0 %507
    %511 = vset.pattern.permute.xlu0 0
    %512 = vperm.xlu0 %511, %v258
    %v513 = vpop.permute.xlu0 %512
    %516 = vset.pattern.permute.xlu0 0
    %517 = vperm.xlu0 %516, %v259
    %v518 = vpop.permute.xlu0 %517
    %521 = vset.pattern.permute.xlu0 0
    %522 = vperm.xlu0 %521, %v260
    %v523 = vpop.permute.xlu0 %522
    %526 = vset.pattern.permute.xlu0 0
    %527 = vperm.xlu0 %526, %v261
    %v528 = vpop.permute.xlu0 %527
    %531 = vset.pattern.permute.xlu0 0
    %532 = vperm.xlu0 %531, %v262
    %v533 = vpop.permute.xlu0 %532
    %536 = vset.pattern.permute.xlu0 0
    %537 = vperm.xlu0 %536, %v263
    %v538 = vpop.permute.xlu0 %537
    %541 = vset.pattern.permute.xlu0 0
    %542 = vperm.xlu0 %541, %v264
    %v543 = vpop.permute.xlu0 %542
    %546 = vset.pattern.permute.xlu0 0
    %547 = vperm.xlu0 %546, %v265
    %v548 = vpop.permute.xlu0 %547
    %551 = vset.pattern.permute.xlu0 0
    %552 = vperm.xlu0 %551, %v266
    %v553 = vpop.permute.xlu0 %552
    %556 = vset.pattern.permute.xlu0 0
    %557 = vperm.xlu0 %556, %v267
    %v558 = vpop.permute.xlu0 %557
    %561 = vset.pattern.permute.xlu0 0
    %562 = vperm.xlu0 %561, %v268
    %v563 = vpop.permute.xlu0 %562
    %566 = vset.pattern.permute.xlu0 0
    %567 = vperm.xlu0 %566, %v269
    %v568 = vpop.permute.xlu0 %567
    %571 = vset.pattern.permute.xlu0 0
    %572 = vperm.xlu0 %571, %v270
    %v573 = vpop.permute.xlu0 %572
    %576 = vset.pattern.permute.xlu0 0
    %577 = vperm.xlu0 %576, %v271
    %v578 = vpop.permute.xlu0 %577
    %581 = vset.pattern.permute.xlu0 0
    %582 = vperm.xlu0 %581, %v272
    %v583 = vpop.permute.xlu0 %582
    %586 = vset.pattern.permute.xlu0 0
    %587 = vperm.xlu0 %586, %v273
    %v588 = vpop.permute.xlu0 %587
    %591 = vset.pattern.permute.xlu0 0
    %592 = vperm.xlu0 %591, %v274
    %v593 = vpop.permute.xlu0 %592
    %v595 = vmul.f32 %v147, %v278
    %v596 = vmul.f32 %v148, %v283
    %v597 = vmul.f32 %v149, %v288
    %v598 = vmul.f32 %v150, %v293
    %v599 = vmul.f32 %v151, %v298
    %v600 = vmul.f32 %v152, %v303
    %v601 = vmul.f32 %v153, %v308
    %v602 = vmul.f32 %v154, %v313
    %v603 = vmul.f32 %v155, %v318
    %v604 = vmul.f32 %v156, %v323
    %v605 = vmul.f32 %v157, %v328
    %v606 = vmul.f32 %v158, %v333
    %v607 = vmul.f32 %v159, %v338
    %v608 = vmul.f32 %v160, %v343
    %v609 = vmul.f32 %v161, %v348
    %v610 = vmul.f32 %v162, %v353
    %v611 = vmul.f32 %v163, %v358
    %v612 = vmul.f32 %v164, %v363
    %v613 = vmul.f32 %v165, %v368
    %v614 = vmul.f32 %v166, %v373
    %v615 = vmul.f32 %v167, %v378
    %v616 = vmul.f32 %v168, %v383
    %v617 = vmul.f32 %v169, %v388
    %v618 = vmul.f32 %v170, %v393
    %v619 = vmul.f32 %v171, %v398
    %v620 = vmul.f32 %v172, %v403
    %v621 = vmul.f32 %v173, %v408
    %v622 = vmul.f32 %v174, %v413
    %v623 = vmul.f32 %v175, %v418
    %v624 = vmul.f32 %v176, %v423
    %v625 = vmul.f32 %v177, %v428
    %v626 = vmul.f32 %v178, %v433
    %v627 = vmul.f32 %v179, %v438
    %v628 = vmul.f32 %v180, %v443
    %v629 = vmul.f32 %v181, %v448
    %v630 = vmul.f32 %v182, %v453
    %v631 = vmul.f32 %v183, %v458
    %v632 = vmul.f32 %v184, %v463
    %v633 = vmul.f32 %v185, %v468
    %v634 = vmul.f32 %v186, %v473
    %v635 = vmul.f32 %v187, %v478
    %v636 = vmul.f32 %v188, %v483
    %v637 = vmul.f32 %v189, %v488
    %v638 = vmul.f32 %v190, %v493
    %v639 = vmul.f32 %v191, %v498
    %v640 = vmul.f32 %v192, %v503
    %v641 = vmul.f32 %v193, %v508
    %v642 = vmul.f32 %v194, %v513
    %v643 = vmul.f32 %v195, %v518
    %v644 = vmul.f32 %v196, %v523
    %v645 = vmul.f32 %v197, %v528
    %v646 = vmul.f32 %v198, %v533
    %v647 = vmul.f32 %v199, %v538
    %v648 = vmul.f32 %v200, %v543
    %v649 = vmul.f32 %v201, %v548
    %v650 = vmul.f32 %v202, %v553
    %v651 = vmul.f32 %v203, %v558
    %v652 = vmul.f32 %v204, %v563
    %v653 = vmul.f32 %v205, %v568
    %v654 = vmul.f32 %v206, %v573
    %v655 = vmul.f32 %v207, %v578
    %v656 = vmul.f32 %v208, %v583
    %v657 = vmul.f32 %v209, %v588
    %v658 = vmul.f32 %v210, %v593
    %v659 = vadd.f32 %v595, %v596
    %v660 = vadd.f32 %v659, %v597
    %v661 = vadd.f32 %v660, %v598
    %v662 = vadd.f32 %v661, %v599
    %v663 = vadd.f32 %v662, %v600
    %v664 = vadd.f32 %v663, %v601
    %v665 = vadd.f32 %v664, %v602
    %v666 = vadd.f32 %v665, %v603
    %v667 = vadd.f32 %v666, %v604
    %v668 = vadd.f32 %v667, %v605
    %v669 = vadd.f32 %v668, %v606
    %v670 = vadd.f32 %v669, %v607
    %v671 = vadd.f32 %v670, %v608
    %v672 = vadd.f32 %v671, %v609
    %v673 = vadd.f32 %v672, %v610
    %v674 = vadd.f32 %v673, %v611
    %v675 = vadd.f32 %v674, %v612
    %v676 = vadd.f32 %v675, %v613
    %v677 = vadd.f32 %v676, %v614
    %v678 = vadd.f32 %v677, %v615
    %v679 = vadd.f32 %v678, %v616
    %v680 = vadd.f32 %v679, %v617
    %v681 = vadd.f32 %v680, %v618
    %v682 = vadd.f32 %v681, %v619
    %v683 = vadd.f32 %v682, %v620
    %v684 = vadd.f32 %v683, %v621
    %v685 = vadd.f32 %v684, %v622
    %v686 = vadd.f32 %v685, %v623
    %v687 = vadd.f32 %v686, %v624
    %v688 = vadd.f32 %v687, %v625
    %v689 = vadd.f32 %v688, %v626
    %v690 = vadd.f32 %v689, %v627
    %v691 = vadd.f32 %v690, %v628
    %v692 = vadd.f32 %v691, %v629
    %v693 = vadd.f32 %v692, %v630
    %v694 = vadd.f32 %v693, %v631
    %v695 = vadd.f32 %v694, %v632
    %v696 = vadd.f32 %v695, %v633
    %v697 = vadd.f32 %v696, %v634
    %v698 = vadd.f32 %v697, %v635
    %v699 = vadd.f32 %v698, %v636
    %v700 = vadd.f32 %v699, %v637
    %v701 = vadd.f32 %v700, %v638
    %v702 = vadd.f32 %v701, %v639
    %v703 = vadd.f32 %v702, %v640
    %v704 = vadd.f32 %v703, %v641
    %v705 = vadd.f32 %v704, %v642
    %v706 = vadd.f32 %v705, %v643
    %v707 = vadd.f32 %v706, %v644
    %v708 = vadd.f32 %v707, %v645
    %v709 = vadd.f32 %v708, %v646
    %v710 = vadd.f32 %v709, %v647
    %v711 = vadd.f32 %v710, %v648
    %v712 = vadd.f32 %v711, %v649
    %v713 = vadd.f32 %v712, %v650
    %v714 = vadd.f32 %v713, %v651
    %v715 = vadd.f32 %v714, %v652
    %v716 = vadd.f32 %v715, %v653
    %v717 = vadd.f32 %v716, %v654
    %v718 = vadd.f32 %v717, %v655
    %v719 = vadd.f32 %v718, %v656
    %v720 = vadd.f32 %v719, %v657
    %v721 = vadd.f32 %v720, %v658
    %722 = vadd.xlane.f32.xlu0 %v721
    %v723 = vpop.xlane.xlu0 %722
    %v724 = vrot.slane %v723, 4
    %v725 = vadd.f32 %v723, %v724
    %v726 = vrot.slane %v725, 2
    %v727 = vadd.f32 %v725, %v726
    %v728 = vrot.slane %v727, 1
    %v729 = vadd.f32 %v727, %v728
    %s730 = vtos %v729
    %v731 = vstv %s730
    %v732 = vadd.f32 %v146, %v731
    %vm733 = vcmask 0
    %734 = vst.msk [vmem:[#allocation2] sm:$0x1] %vm733, %v732
    // Predicated region
    $region14: #{tpu_custom_call.1} parent=1 // pred_check
      %p735 = pneg %p12
    $region15: #{tpu_custom_call.1} parent=1 // pred_check_branch
      %737 = sbr.rel (%p735) target = $region17
    $region16: #{tpu_custom_call.1} parent=1 // pred_region
      %v738 = vld [vmem:[#allocation2] sm:$0x1]
      %739 = vst.msk [vmem:[#allocation3] sm:$0x1] %vm733, %v738
    $region17: #{tpu_custom_call.1} parent=1 // pred_fallthru
      _
    // Predicated region
    $region18: #{tpu_custom_call.1} parent=1 // pred_check
      _
    $region19: #{tpu_custom_call.1} parent=1 // pred_check_branch
      %741 = sbr.rel (0) target = $region21
    $region20: #{tpu_custom_call.1} parent=1 // pred_region
      %s743 = ssub.s32 16, 16
      %744 = vsyncadd [#allocation4], %s743
      %s746 = sshll.u32 [#allocation3], 4
      %s747 = int_to_ptr.vmem [resolvable:$true] %s746
      %749 = dma.vmem_to_hbm [thread:$0]  %s747, 16, %s2, [#allocation4]
    $region21: #{tpu_custom_call.1} parent=1 // pred_fallthru
      _
    // Predicated region
    $region22: #{tpu_custom_call.1} parent=1 // pred_check
      _
    $region23: #{tpu_custom_call.1} parent=1 // pred_check_branch
      %751 = sbr.rel (0) target = $region25
    $region24: #{tpu_custom_call.1} parent=1 // pred_region
      %752 = dma.done [#allocation4], 16
    $region25: #{tpu_custom_call.1} parent=1 // pred_fallthru
      _
    %753 = vsyncpa [#allocation4], 1

</llo_original>
